<compile_context>
chip_gen: v5e
topology: v5e:2x2
jax: 0.10.0
libtpu: 0.0.40
codegen_flags: <defaults>
</compile_context>

<pallas_src>
import functools

import numpy as np
import jax
import jax.numpy as jnp
from jax import lax
from jax.experimental import pallas as pl
from jax.experimental.pallas import tpu as pltpu

SIGMA = 3
THRESHOLD = 0.25
R = int(3 * SIGMA)              # Gaussian radius -> kernel size 2R+1 = 19


def _gauss_taps(sigma, radius):
    w = np.exp(-0.5 * (np.arange(-radius, radius + 1, dtype=np.float64) / sigma) ** 2)
    return w / w.sum()


GW = _gauss_taps(SIGMA, R)      # 1-D separable Gaussian taps (numpy f64)


# ----------------------------------------------------------------------------
# Constant banded (Toeplitz) operators for the composed blur + Sobel pipeline
# ----------------------------------------------------------------------------
def _band_matrix(n, taps, r):
    """Left operator M (n, n) with M[i, q] = taps[q - i + r] for |q - i| <= r.

    `M @ X` applies the 1-D cross-correlation `taps` (zero padded by r) along
    the first axis of X; `X @ M.T` applies it along the last axis.
    """
    taps = np.asarray(taps, np.float64)
    idx = np.arange(n)
    d = idx[None, :] - idx[:, None]                       # d[i, q] = q - i
    return np.where(np.abs(d) <= r,
                    np.take(taps, np.clip(d + r, 0, 2 * r)), 0.0)


@functools.lru_cache(maxsize=None)
def _edge_operators(H, W):
    """Composed operators so that gx = Lx @ X @ Rx and gy = Ly @ X @ Ry.

    Exact composition (matrix associativity) of
      B  = Gv @ X @ Gh          (Gaussian blur, zero pad R)
      gx = Sv_smooth @ B @ Sh_diff,   gy = Sv_diff @ B @ Sh_smooth  (zero pad 1)
    so the boundary handling matches F.conv2d(padding=R) then F.conv2d(padding=1).
    """
    gv = _band_matrix(H, GW, R)                            # left Gaussian  (H, H)
    gh = _band_matrix(W, GW, R).T                          # right Gaussian (W, W)
    smooth = np.array([1.0, 2.0, 1.0])
    diff = np.array([1.0, 0.0, -1.0])
    lx = _band_matrix(H, smooth, 1) @ gv                   # (H, H)
    ly = _band_matrix(H, diff, 1) @ gv                     # (H, H)
    rx = gh @ _band_matrix(W, diff, 1).T                   # (W, W)
    ry = gh @ _band_matrix(W, smooth, 1).T                 # (W, W)
    as_f32 = lambda a: jnp.asarray(a, jnp.float32)
    return as_f32(lx), as_f32(ly), as_f32(rx), as_f32(ry)


# ----------------------------------------------------------------------------
# In-kernel compute: thresholded edge magnitude for a block of `gb` planes
# ----------------------------------------------------------------------------
def _edge_block(x, lx, ly, rx, ry, gb):
    """x: (gb, H, W) f32 -> list of gb (H, W) thresholded edge-magnitude planes."""
    planes = []
    for b in range(gb):                                    # static unroll, gb <= 8
        xb = x[b]
        gx = jnp.dot(jnp.dot(lx, xb, preferred_element_type=jnp.float32), rx,
                     preferred_element_type=jnp.float32)
        gy = jnp.dot(jnp.dot(ly, xb, preferred_element_type=jnp.float32), ry,
                     preferred_element_type=jnp.float32)
        mag = jnp.sqrt(gx * gx + gy * gy)
        planes.append(jnp.where(mag < THRESHOLD, 0.0, mag))
    return planes


# ----------------------------------------------------------------------------
# Kernel A: raw edge map (used once at init to build target / norm denominator)
# ----------------------------------------------------------------------------
def _edge_map_kernel(lx_ref, ly_ref, rx_ref, ry_ref, x_ref, out_ref, *, gb):
    planes = _edge_block(x_ref[...].astype(jnp.float32),
                         lx_ref[...], ly_ref[...], rx_ref[...], ry_ref[...], gb)
    for b in range(gb):
        out_ref[b] = planes[b]


# ----------------------------------------------------------------------------
# Kernel B: fused edge(img) + per-plane squared-error partial sums vs raw target
# ----------------------------------------------------------------------------
def _loss_kernel(lx_ref, ly_ref, rx_ref, ry_ref, x_ref, t_ref, out_ref, *, gb):
    planes = _edge_block(x_ref[...].astype(jnp.float32),
                         lx_ref[...], ly_ref[...], rx_ref[...], ry_ref[...], gb)
    flat = (lax.broadcasted_iota(jnp.int32, (8, 128), 0) * 128
            + lax.broadcasted_iota(jnp.int32, (8, 128), 1))
    acc = jnp.zeros((8, 128), jnp.float32)
    for b in range(gb):
        d = planes[b] - t_ref[b]
        acc = acc + jnp.where(flat == b, jnp.sum(d * d), 0.0)   # per-plane partials
    out_ref[...] = acc


# ----------------------------------------------------------------------------
# Wrappers
# ----------------------------------------------------------------------------
def _choose_block(G, H, W):
    """Largest divisor of G that is <= 8 and keeps a plane block under ~2 MiB."""
    cap = max(1, min(8, (2 << 20) // max(1, H * W * 4)))
    gb = 1
    for d in range(1, cap + 1):
        if G % d == 0:
            gb = d
    return gb


def _vmem_limit_bytes(gb, H, W, itemsize):
    blk_img = gb * H * W * itemsize * 2            # image block, double-buffered
    blk_tgt = gb * H * W * 4 * 2                   # target block (f32), double-buffered
    ops = (2 * H * H + 2 * W * W) * 4 * 2          # 4 band operators, double-buffered
    out = 8 * 128 * 4 * 2
    est = blk_img + blk_tgt + ops + out
    # Generous headroom, but stay well under v7x's 64 MiB physical VMEM.
    return int(min(max(4 * est, 16 << 20), 40 << 20))


def edge_map_flat(img_flat):
    """img_flat: (G, H, W) -> (G, H, W) f32 raw blurred-Sobel thresholded edge map."""
    G, H, W = img_flat.shape
    gb = _choose_block(G, H, W)
    lx, ly, rx, ry = _edge_operators(H, W)
    return pl.pallas_call(
        functools.partial(_edge_map_kernel, gb=gb),
        out_shape=jax.ShapeDtypeStruct((G, H, W), jnp.float32),
        grid=(G // gb,),
        in_specs=[
            pl.BlockSpec((H, H), lambda g: (0, 0)),
            pl.BlockSpec((H, H), lambda g: (0, 0)),
            pl.BlockSpec((W, W), lambda g: (0, 0)),
            pl.BlockSpec((W, W), lambda g: (0, 0)),
            pl.BlockSpec((gb, H, W), lambda g: (g, 0, 0)),
        ],
        out_specs=pl.BlockSpec((gb, H, W), lambda g: (g, 0, 0)),
        compiler_params=pltpu.CompilerParams(
            dimension_semantics=("parallel",),
            vmem_limit_bytes=_vmem_limit_bytes(gb, H, W, img_flat.dtype.itemsize),
        ),
    )(lx, ly, rx, ry, img_flat)


def edge_sq_err_sum(img_flat, target_raw_flat):
    """sum over all pixels of (edge(img) - target_raw)^2 (both unnormalized)."""
    G, H, W = img_flat.shape
    gb = _choose_block(G, H, W)
    nb = G // gb
    lx, ly, rx, ry = _edge_operators(H, W)
    partial = pl.pallas_call(
        functools.partial(_loss_kernel, gb=gb),
        out_shape=jax.ShapeDtypeStruct((nb * 8, 128), jnp.float32),
        grid=(nb,),
        in_specs=[
            pl.BlockSpec((H, H), lambda g: (0, 0)),
            pl.BlockSpec((H, H), lambda g: (0, 0)),
            pl.BlockSpec((W, W), lambda g: (0, 0)),
            pl.BlockSpec((W, W), lambda g: (0, 0)),
            pl.BlockSpec((gb, H, W), lambda g: (g, 0, 0)),
            pl.BlockSpec((gb, H, W), lambda g: (g, 0, 0)),
        ],
        out_specs=pl.BlockSpec((8, 128), lambda g: (g, 0)),
        compiler_params=pltpu.CompilerParams(
            dimension_semantics=("parallel",),
            vmem_limit_bytes=_vmem_limit_bytes(gb, H, W, img_flat.dtype.itemsize),
        ),
    )(lx, ly, rx, ry, img_flat, target_raw_flat)
    return jnp.sum(partial)


class BlurredSobelEdgeLoss:
    """Forward-only JAX/Pallas port of cast.loss.l2.BlurredSobelEdgeLoss."""

    def __init__(self, target, sigma=3, threshold=0.25):
        assert sigma == SIGMA and threshold == THRESHOLD   # baked into kernel constants
        N, C, H, W = target.shape
        self._shape = (N, C, H, W)
        tmap = edge_map_flat(target.reshape(N * C, H, W))  # raw edge map (G, H, W)
        self.norm_denominator = jnp.max(tmap)
        self._target_raw = tmap                            # unnormalized; scaling folded into the loss
        self.target = (tmap / self.norm_denominator).reshape(N, C, H, W)

    def __call__(self, img, features=None):
        N, C, H, W = img.shape
        sq_sum = edge_sq_err_sum(img.reshape(N * C, H, W), self._target_raw)
        inv = 1.0 / self.norm_denominator
        # mean((edge*inv - target_raw*inv)^2) == inv^2 * sum((edge - target_raw)^2) / numel
        return sq_sum * (inv * inv) / (N * C * H * W)


# ----------------------------------------------------------------------------
# Pure-JAX reference (PyTorch-style: pad R -> blur -> pad 1 -> sobel)
# ----------------------------------------------------------------------------
def _reference_loss(img, target):
    gw = jnp.asarray(GW, jnp.float32)

    def apply(x):
        x = x.astype(jnp.float32)
        N, C, H, W = x.shape
        xp = jnp.pad(x, ((0, 0), (0, 0), (R, R), (R, R)))
        th = sum(gw[d] * xp[:, :, :, d:d + W] for d in range(2 * R + 1))
        b = sum(gw[d] * th[:, :, d:d + H, :] for d in range(2 * R + 1))
        bp = jnp.pad(b, ((0, 0), (0, 0), (1, 1), (1, 1)))
        gx = (bp[:, :, 0:H, 0:W] - bp[:, :, 0:H, 2:W + 2]
              + 2 * bp[:, :, 1:H + 1, 0:W] - 2 * bp[:, :, 1:H + 1, 2:W + 2]
              + bp[:, :, 2:H + 2, 0:W] - bp[:, :, 2:H + 2, 2:W + 2])
        gy = (bp[:, :, 0:H, 0:W] + 2 * bp[:, :, 0:H, 1:W + 1] + bp[:, :, 0:H, 2:W + 2]
              - bp[:, :, 2:H + 2, 0:W] - 2 * bp[:, :, 2:H + 2, 1:W + 1] - bp[:, :, 2:H + 2, 2:W + 2])
        mag = jnp.sqrt(gx * gx + gy * gy)
        return jnp.where(mag < THRESHOLD, 0.0, mag)

    tmap = apply(target)
    norm = jnp.max(tmap)
    return jnp.mean((apply(img) / norm - tmap / norm) ** 2)


if __name__ == "__main__":
    N, C, H, W = 2, 3, 16, 16
    key = jax.random.PRNGKey(0)
    k1, k2 = jax.random.split(key)

    # Images with a sharp vertical / horizontal edge plus noise so that the
    # blurred Sobel magnitude actually exceeds the 0.25 threshold.
    col = jnp.arange(W, dtype=jnp.float32)[None, None, None, :]
    row = jnp.arange(H, dtype=jnp.float32)[None, None, :, None]
    target = (col >= W // 2).astype(jnp.float32) * jnp.ones((N, C, H, W)) \
        + 0.1 * jax.random.uniform(k1, (N, C, H, W), dtype=jnp.float32)
    img = (row >= H // 2).astype(jnp.float32) * jnp.ones((N, C, H, W)) \
        + 0.1 * jax.random.uniform(k2, (N, C, H, W), dtype=jnp.float32)

    loss_mod = BlurredSobelEdgeLoss(target)
    loss = loss_mod(img)
    jax.block_until_ready(loss)

    ref = _reference_loss(img, target)
    # MXU f32 band-matmul vs. VPU slice-sum blur may differ in the last bits
    # (and, pathologically, flip a pixel sitting exactly at the threshold).
    np.testing.assert_allclose(np.asarray(loss), np.asarray(ref), rtol=2e-3, atol=1e-6)

    print("KERNEL_OK")
</pallas_src>

<mosaic_0001>
module attributes {stable_mosaic.version = 11 : i64} {
  func.func @_edge_map_kernel(%arg0: i32, %arg1: memref<16x16xf32, #tpu.memory_space<vmem>>, %arg2: memref<16x16xf32, #tpu.memory_space<vmem>>, %arg3: memref<16x16xf32, #tpu.memory_space<vmem>>, %arg4: memref<16x16xf32, #tpu.memory_space<vmem>>, %arg5: memref<6x16x16xf32, #tpu.memory_space<vmem>>, %arg6: memref<6x16x16xf32, #tpu.memory_space<vmem>>) attributes {dimension_semantics = [#tpu.dimension_semantics<parallel>], iteration_bounds = array<i64: 1>, scalar_prefetch = 0 : i64, scratch_operands = 0 : i64, tpu.core_type = #tpu.core_type<tc>, window_params = [{pipeline_mode = #tpu.pipeline_mode<synchronous>, transform_indices = @transform_0, window_bounds = array<i64: 16, 16>}, {pipeline_mode = #tpu.pipeline_mode<synchronous>, transform_indices = @transform_1, window_bounds = array<i64: 16, 16>}, {pipeline_mode = #tpu.pipeline_mode<synchronous>, transform_indices = @transform_2, window_bounds = array<i64: 16, 16>}, {pipeline_mode = #tpu.pipeline_mode<synchronous>, transform_indices = @transform_3, window_bounds = array<i64: 16, 16>}, {transform_indices = @transform_4, window_bounds = array<i64: 6, 16, 16>}, {transform_indices = @transform_5, window_bounds = array<i64: 6, 16, 16>}]} {
    %c0 = arith.constant 0 : index
    %c0_0 = arith.constant 0 : index
    %c0_1 = arith.constant 0 : index
    %0 = vector.load %arg5[%c0, %c0_0, %c0_1] : memref<6x16x16xf32, #tpu.memory_space<vmem>>, vector<6x16x16xf32>
    %c0_2 = arith.constant 0 : index
    %c0_3 = arith.constant 0 : index
    %1 = vector.load %arg1[%c0_2, %c0_3] : memref<16x16xf32, #tpu.memory_space<vmem>>, vector<16x16xf32>
    %c0_4 = arith.constant 0 : index
    %c0_5 = arith.constant 0 : index
    %2 = vector.load %arg2[%c0_4, %c0_5] : memref<16x16xf32, #tpu.memory_space<vmem>>, vector<16x16xf32>
    %c0_6 = arith.constant 0 : index
    %c0_7 = arith.constant 0 : index
    %3 = vector.load %arg3[%c0_6, %c0_7] : memref<16x16xf32, #tpu.memory_space<vmem>>, vector<16x16xf32>
    %c0_8 = arith.constant 0 : index
    %c0_9 = arith.constant 0 : index
    %4 = vector.load %arg4[%c0_8, %c0_9] : memref<16x16xf32, #tpu.memory_space<vmem>>, vector<16x16xf32>
    %5 = vector.extract_strided_slice %0 {offsets = [0, 0, 0], sizes = [1, 16, 16], strides = [1, 1, 1]} : vector<6x16x16xf32> to vector<1x16x16xf32>
    %6 = vector.shape_cast %5 : vector<1x16x16xf32> to vector<16x16xf32>
    %cst = arith.constant dense<0.000000e+00> : vector<16x16xf32>
    %7 = tpu.matmul %1, %6, %cst {dimension_numbers = #tpu.dot_dimension_numbers<[1], [0], [0], [1], [0, 0, 1, 1], [], []>} : vector<16x16xf32>, vector<16x16xf32>, vector<16x16xf32> -> vector<16x16xf32>
    %cst_10 = arith.constant dense<0.000000e+00> : vector<16x16xf32>
    %8 = tpu.matmul %7, %3, %cst_10 {dimension_numbers = #tpu.dot_dimension_numbers<[1], [0], [0], [1], [0, 0, 1, 1], [], []>} : vector<16x16xf32>, vector<16x16xf32>, vector<16x16xf32> -> vector<16x16xf32>
    %cst_11 = arith.constant dense<0.000000e+00> : vector<16x16xf32>
    %9 = tpu.matmul %2, %6, %cst_11 {dimension_numbers = #tpu.dot_dimension_numbers<[1], [0], [0], [1], [0, 0, 1, 1], [], []>} : vector<16x16xf32>, vector<16x16xf32>, vector<16x16xf32> -> vector<16x16xf32>
    %cst_12 = arith.constant dense<0.000000e+00> : vector<16x16xf32>
    %10 = tpu.matmul %9, %4, %cst_12 {dimension_numbers = #tpu.dot_dimension_numbers<[1], [0], [0], [1], [0, 0, 1, 1], [], []>} : vector<16x16xf32>, vector<16x16xf32>, vector<16x16xf32> -> vector<16x16xf32>
    %11 = arith.mulf %8, %8 : vector<16x16xf32>
    %12 = arith.mulf %10, %10 : vector<16x16xf32>
    %13 = arith.addf %11, %12 : vector<16x16xf32>
    %14 = math.sqrt %13 : vector<16x16xf32>
    %cst_13 = arith.constant 2.500000e-01 : f32
    %15 = vector.broadcast %cst_13 : f32 to vector<16x16xf32>
    %16 = arith.cmpf olt, %14, %15 : vector<16x16xf32>
    %cst_14 = arith.constant 0.000000e+00 : f32
    %17 = vector.broadcast %cst_14 : f32 to vector<16x16xf32>
    %18 = arith.select %16, %17, %14 : vector<16x16xi1>, vector<16x16xf32>
    %19 = vector.extract_strided_slice %0 {offsets = [1, 0, 0], sizes = [1, 16, 16], strides = [1, 1, 1]} : vector<6x16x16xf32> to vector<1x16x16xf32>
    %20 = vector.shape_cast %19 : vector<1x16x16xf32> to vector<16x16xf32>
    %cst_15 = arith.constant dense<0.000000e+00> : vector<16x16xf32>
    %21 = tpu.matmul %1, %20, %cst_15 {dimension_numbers = #tpu.dot_dimension_numbers<[1], [0], [0], [1], [0, 0, 1, 1], [], []>} : vector<16x16xf32>, vector<16x16xf32>, vector<16x16xf32> -> vector<16x16xf32>
    %cst_16 = arith.constant dense<0.000000e+00> : vector<16x16xf32>
    %22 = tpu.matmul %21, %3, %cst_16 {dimension_numbers = #tpu.dot_dimension_numbers<[1], [0], [0], [1], [0, 0, 1, 1], [], []>} : vector<16x16xf32>, vector<16x16xf32>, vector<16x16xf32> -> vector<16x16xf32>
    %cst_17 = arith.constant dense<0.000000e+00> : vector<16x16xf32>
    %23 = tpu.matmul %2, %20, %cst_17 {dimension_numbers = #tpu.dot_dimension_numbers<[1], [0], [0], [1], [0, 0, 1, 1], [], []>} : vector<16x16xf32>, vector<16x16xf32>, vector<16x16xf32> -> vector<16x16xf32>
    %cst_18 = arith.constant dense<0.000000e+00> : vector<16x16xf32>
    %24 = tpu.matmul %23, %4, %cst_18 {dimension_numbers = #tpu.dot_dimension_numbers<[1], [0], [0], [1], [0, 0, 1, 1], [], []>} : vector<16x16xf32>, vector<16x16xf32>, vector<16x16xf32> -> vector<16x16xf32>
    %25 = arith.mulf %22, %22 : vector<16x16xf32>
    %26 = arith.mulf %24, %24 : vector<16x16xf32>
    %27 = arith.addf %25, %26 : vector<16x16xf32>
    %28 = math.sqrt %27 : vector<16x16xf32>
    %cst_19 = arith.constant 2.500000e-01 : f32
    %29 = vector.broadcast %cst_19 : f32 to vector<16x16xf32>
    %30 = arith.cmpf olt, %28, %29 : vector<16x16xf32>
    %cst_20 = arith.constant 0.000000e+00 : f32
    %31 = vector.broadcast %cst_20 : f32 to vector<16x16xf32>
    %32 = arith.select %30, %31, %28 : vector<16x16xi1>, vector<16x16xf32>
    %33 = vector.extract_strided_slice %0 {offsets = [2, 0, 0], sizes = [1, 16, 16], strides = [1, 1, 1]} : vector<6x16x16xf32> to vector<1x16x16xf32>
    %34 = vector.shape_cast %33 : vector<1x16x16xf32> to vector<16x16xf32>
    %cst_21 = arith.constant dense<0.000000e+00> : vector<16x16xf32>
    %35 = tpu.matmul %1, %34, %cst_21 {dimension_numbers = #tpu.dot_dimension_numbers<[1], [0], [0], [1], [0, 0, 1, 1], [], []>} : vector<16x16xf32>, vector<16x16xf32>, vector<16x16xf32> -> vector<16x16xf32>
    %cst_22 = arith.constant dense<0.000000e+00> : vector<16x16xf32>
    %36 = tpu.matmul %35, %3, %cst_22 {dimension_numbers = #tpu.dot_dimension_numbers<[1], [0], [0], [1], [0, 0, 1, 1], [], []>} : vector<16x16xf32>, vector<16x16xf32>, vector<16x16xf32> -> vector<16x16xf32>
    %cst_23 = arith.constant dense<0.000000e+00> : vector<16x16xf32>
    %37 = tpu.matmul %2, %34, %cst_23 {dimension_numbers = #tpu.dot_dimension_numbers<[1], [0], [0], [1], [0, 0, 1, 1], [], []>} : vector<16x16xf32>, vector<16x16xf32>, vector<16x16xf32> -> vector<16x16xf32>
    %cst_24 = arith.constant dense<0.000000e+00> : vector<16x16xf32>
    %38 = tpu.matmul %37, %4, %cst_24 {dimension_numbers = #tpu.dot_dimension_numbers<[1], [0], [0], [1], [0, 0, 1, 1], [], []>} : vector<16x16xf32>, vector<16x16xf32>, vector<16x16xf32> -> vector<16x16xf32>
    %39 = arith.mulf %36, %36 : vector<16x16xf32>
    %40 = arith.mulf %38, %38 : vector<16x16xf32>
    %41 = arith.addf %39, %40 : vector<16x16xf32>
    %42 = math.sqrt %41 : vector<16x16xf32>
    %cst_25 = arith.constant 2.500000e-01 : f32
    %43 = vector.broadcast %cst_25 : f32 to vector<16x16xf32>
    %44 = arith.cmpf olt, %42, %43 : vector<16x16xf32>
    %cst_26 = arith.constant 0.000000e+00 : f32
    %45 = vector.broadcast %cst_26 : f32 to vector<16x16xf32>
    %46 = arith.select %44, %45, %42 : vector<16x16xi1>, vector<16x16xf32>
    %47 = vector.extract_strided_slice %0 {offsets = [3, 0, 0], sizes = [1, 16, 16], strides = [1, 1, 1]} : vector<6x16x16xf32> to vector<1x16x16xf32>
    %48 = vector.shape_cast %47 : vector<1x16x16xf32> to vector<16x16xf32>
    %cst_27 = arith.constant dense<0.000000e+00> : vector<16x16xf32>
    %49 = tpu.matmul %1, %48, %cst_27 {dimension_numbers = #tpu.dot_dimension_numbers<[1], [0], [0], [1], [0, 0, 1, 1], [], []>} : vector<16x16xf32>, vector<16x16xf32>, vector<16x16xf32> -> vector<16x16xf32>
    %cst_28 = arith.constant dense<0.000000e+00> : vector<16x16xf32>
    %50 = tpu.matmul %49, %3, %cst_28 {dimension_numbers = #tpu.dot_dimension_numbers<[1], [0], [0], [1], [0, 0, 1, 1], [], []>} : vector<16x16xf32>, vector<16x16xf32>, vector<16x16xf32> -> vector<16x16xf32>
    %cst_29 = arith.constant dense<0.000000e+00> : vector<16x16xf32>
    %51 = tpu.matmul %2, %48, %cst_29 {dimension_numbers = #tpu.dot_dimension_numbers<[1], [0], [0], [1], [0, 0, 1, 1], [], []>} : vector<16x16xf32>, vector<16x16xf32>, vector<16x16xf32> -> vector<16x16xf32>
    %cst_30 = arith.constant dense<0.000000e+00> : vector<16x16xf32>
    %52 = tpu.matmul %51, %4, %cst_30 {dimension_numbers = #tpu.dot_dimension_numbers<[1], [0], [0], [1], [0, 0, 1, 1], [], []>} : vector<16x16xf32>, vector<16x16xf32>, vector<16x16xf32> -> vector<16x16xf32>
    %53 = arith.mulf %50, %50 : vector<16x16xf32>
    %54 = arith.mulf %52, %52 : vector<16x16xf32>
    %55 = arith.addf %53, %54 : vector<16x16xf32>
    %56 = math.sqrt %55 : vector<16x16xf32>
    %cst_31 = arith.constant 2.500000e-01 : f32
    %57 = vector.broadcast %cst_31 : f32 to vector<16x16xf32>
    %58 = arith.cmpf olt, %56, %57 : vector<16x16xf32>
    %cst_32 = arith.constant 0.000000e+00 : f32
    %59 = vector.broadcast %cst_32 : f32 to vector<16x16xf32>
    %60 = arith.select %58, %59, %56 : vector<16x16xi1>, vector<16x16xf32>
    %61 = vector.extract_strided_slice %0 {offsets = [4, 0, 0], sizes = [1, 16, 16], strides = [1, 1, 1]} : vector<6x16x16xf32> to vector<1x16x16xf32>
    %62 = vector.shape_cast %61 : vector<1x16x16xf32> to vector<16x16xf32>
    %cst_33 = arith.constant dense<0.000000e+00> : vector<16x16xf32>
    %63 = tpu.matmul %1, %62, %cst_33 {dimension_numbers = #tpu.dot_dimension_numbers<[1], [0], [0], [1], [0, 0, 1, 1], [], []>} : vector<16x16xf32>, vector<16x16xf32>, vector<16x16xf32> -> vector<16x16xf32>
    %cst_34 = arith.constant dense<0.000000e+00> : vector<16x16xf32>
    %64 = tpu.matmul %63, %3, %cst_34 {dimension_numbers = #tpu.dot_dimension_numbers<[1], [0], [0], [1], [0, 0, 1, 1], [], []>} : vector<16x16xf32>, vector<16x16xf32>, vector<16x16xf32> -> vector<16x16xf32>
    %cst_35 = arith.constant dense<0.000000e+00> : vector<16x16xf32>
    %65 = tpu.matmul %2, %62, %cst_35 {dimension_numbers = #tpu.dot_dimension_numbers<[1], [0], [0], [1], [0, 0, 1, 1], [], []>} : vector<16x16xf32>, vector<16x16xf32>, vector<16x16xf32> -> vector<16x16xf32>
    %cst_36 = arith.constant dense<0.000000e+00> : vector<16x16xf32>
    %66 = tpu.matmul %65, %4, %cst_36 {dimension_numbers = #tpu.dot_dimension_numbers<[1], [0], [0], [1], [0, 0, 1, 1], [], []>} : vector<16x16xf32>, vector<16x16xf32>, vector<16x16xf32> -> vector<16x16xf32>
    %67 = arith.mulf %64, %64 : vector<16x16xf32>
    %68 = arith.mulf %66, %66 : vector<16x16xf32>
    %69 = arith.addf %67, %68 : vector<16x16xf32>
    %70 = math.sqrt %69 : vector<16x16xf32>
    %cst_37 = arith.constant 2.500000e-01 : f32
    %71 = vector.broadcast %cst_37 : f32 to vector<16x16xf32>
    %72 = arith.cmpf olt, %70, %71 : vector<16x16xf32>
    %cst_38 = arith.constant 0.000000e+00 : f32
    %73 = vector.broadcast %cst_38 : f32 to vector<16x16xf32>
    %74 = arith.select %72, %73, %70 : vector<16x16xi1>, vector<16x16xf32>
    %75 = vector.extract_strided_slice %0 {offsets = [5, 0, 0], sizes = [1, 16, 16], strides = [1, 1, 1]} : vector<6x16x16xf32> to vector<1x16x16xf32>
    %76 = vector.shape_cast %75 : vector<1x16x16xf32> to vector<16x16xf32>
    %cst_39 = arith.constant dense<0.000000e+00> : vector<16x16xf32>
    %77 = tpu.matmul %1, %76, %cst_39 {dimension_numbers = #tpu.dot_dimension_numbers<[1], [0], [0], [1], [0, 0, 1, 1], [], []>} : vector<16x16xf32>, vector<16x16xf32>, vector<16x16xf32> -> vector<16x16xf32>
    %cst_40 = arith.constant dense<0.000000e+00> : vector<16x16xf32>
    %78 = tpu.matmul %77, %3, %cst_40 {dimension_numbers = #tpu.dot_dimension_numbers<[1], [0], [0], [1], [0, 0, 1, 1], [], []>} : vector<16x16xf32>, vector<16x16xf32>, vector<16x16xf32> -> vector<16x16xf32>
    %cst_41 = arith.constant dense<0.000000e+00> : vector<16x16xf32>
    %79 = tpu.matmul %2, %76, %cst_41 {dimension_numbers = #tpu.dot_dimension_numbers<[1], [0], [0], [1], [0, 0, 1, 1], [], []>} : vector<16x16xf32>, vector<16x16xf32>, vector<16x16xf32> -> vector<16x16xf32>
    %cst_42 = arith.constant dense<0.000000e+00> : vector<16x16xf32>
    %80 = tpu.matmul %79, %4, %cst_42 {dimension_numbers = #tpu.dot_dimension_numbers<[1], [0], [0], [1], [0, 0, 1, 1], [], []>} : vector<16x16xf32>, vector<16x16xf32>, vector<16x16xf32> -> vector<16x16xf32>
    %81 = arith.mulf %78, %78 : vector<16x16xf32>
    %82 = arith.mulf %80, %80 : vector<16x16xf32>
    %83 = arith.addf %81, %82 : vector<16x16xf32>
    %84 = math.sqrt %83 : vector<16x16xf32>
    %cst_43 = arith.constant 2.500000e-01 : f32
    %85 = vector.broadcast %cst_43 : f32 to vector<16x16xf32>
    %86 = arith.cmpf olt, %84, %85 : vector<16x16xf32>
    %cst_44 = arith.constant 0.000000e+00 : f32
    %87 = vector.broadcast %cst_44 : f32 to vector<16x16xf32>
    %88 = arith.select %86, %87, %84 : vector<16x16xi1>, vector<16x16xf32>
    %c0_45 = arith.constant 0 : index
    %c0_46 = arith.constant 0 : index
    %c0_47 = arith.constant 0 : index
    %89 = vector.load %arg6[%c0_45, %c0_46, %c0_47] : memref<6x16x16xf32, #tpu.memory_space<vmem>>, vector<1x16x16xf32>
    %90 = vector.shape_cast %89 : vector<1x16x16xf32> to vector<16x16xf32>
    %91 = vector.shape_cast %18 : vector<16x16xf32> to vector<1x16x16xf32>
    tpu.vector_store %arg6[%c0_45, %c0_46, %c0_47], %91 {strides = array<i32>} : memref<6x16x16xf32, #tpu.memory_space<vmem>>, vector<1x16x16xf32>,
    %c1 = arith.constant 1 : index
    %c0_48 = arith.constant 0 : index
    %c0_49 = arith.constant 0 : index
    %92 = vector.load %arg6[%c1, %c0_48, %c0_49] : memref<6x16x16xf32, #tpu.memory_space<vmem>>, vector<1x16x16xf32>
    %93 = vector.shape_cast %92 : vector<1x16x16xf32> to vector<16x16xf32>
    %94 = vector.shape_cast %32 : vector<16x16xf32> to vector<1x16x16xf32>
    tpu.vector_store %arg6[%c1, %c0_48, %c0_49], %94 {strides = array<i32>} : memref<6x16x16xf32, #tpu.memory_space<vmem>>, vector<1x16x16xf32>,
    %c2 = arith.constant 2 : index
    %c0_50 = arith.constant 0 : index
    %c0_51 = arith.constant 0 : index
    %95 = vector.load %arg6[%c2, %c0_50, %c0_51] : memref<6x16x16xf32, #tpu.memory_space<vmem>>, vector<1x16x16xf32>
    %96 = vector.shape_cast %95 : vector<1x16x16xf32> to vector<16x16xf32>
    %97 = vector.shape_cast %46 : vector<16x16xf32> to vector<1x16x16xf32>
    tpu.vector_store %arg6[%c2, %c0_50, %c0_51], %97 {strides = array<i32>} : memref<6x16x16xf32, #tpu.memory_space<vmem>>, vector<1x16x16xf32>,
    %c3 = arith.constant 3 : index
    %c0_52 = arith.constant 0 : index
    %c0_53 = arith.constant 0 : index
    %98 = vector.load %arg6[%c3, %c0_52, %c0_53] : memref<6x16x16xf32, #tpu.memory_space<vmem>>, vector<1x16x16xf32>
    %99 = vector.shape_cast %98 : vector<1x16x16xf32> to vector<16x16xf32>
    %100 = vector.shape_cast %60 : vector<16x16xf32> to vector<1x16x16xf32>
    tpu.vector_store %arg6[%c3, %c0_52, %c0_53], %100 {strides = array<i32>} : memref<6x16x16xf32, #tpu.memory_space<vmem>>, vector<1x16x16xf32>,
    %c4 = arith.constant 4 : index
    %c0_54 = arith.constant 0 : index
    %c0_55 = arith.constant 0 : index
    %101 = vector.load %arg6[%c4, %c0_54, %c0_55] : memref<6x16x16xf32, #tpu.memory_space<vmem>>, vector<1x16x16xf32>
    %102 = vector.shape_cast %101 : vector<1x16x16xf32> to vector<16x16xf32>
    %103 = vector.shape_cast %74 : vector<16x16xf32> to vector<1x16x16xf32>
    tpu.vector_store %arg6[%c4, %c0_54, %c0_55], %103 {strides = array<i32>} : memref<6x16x16xf32, #tpu.memory_space<vmem>>, vector<1x16x16xf32>,
    %c5 = arith.constant 5 : index
    %c0_56 = arith.constant 0 : index
    %c0_57 = arith.constant 0 : index
    %104 = vector.load %arg6[%c5, %c0_56, %c0_57] : memref<6x16x16xf32, #tpu.memory_space<vmem>>, vector<1x16x16xf32>
    %105 = vector.shape_cast %104 : vector<1x16x16xf32> to vector<16x16xf32>
    %106 = vector.shape_cast %88 : vector<16x16xf32> to vector<1x16x16xf32>
    tpu.vector_store %arg6[%c5, %c0_56, %c0_57], %106 {strides = array<i32>} : memref<6x16x16xf32, #tpu.memory_space<vmem>>, vector<1x16x16xf32>,
    return
  }
  func.func @transform_0(%arg0: i32) -> (i32, i32) {
    %c0_i32 = arith.constant 0 : i32
    %c0_i32_0 = arith.constant 0 : i32
    %c0_i32_1 = arith.constant 0 : i32
    return %c0_i32, %c0_i32_0 : i32, i32
  }
  func.func @transform_1(%arg0: i32) -> (i32, i32) {
    %c0_i32 = arith.constant 0 : i32
    %c0_i32_0 = arith.constant 0 : i32
    %c0_i32_1 = arith.constant 0 : i32
    return %c0_i32, %c0_i32_0 : i32, i32
  }
  func.func @transform_2(%arg0: i32) -> (i32, i32) {
    %c0_i32 = arith.constant 0 : i32
    %c0_i32_0 = arith.constant 0 : i32
    %c0_i32_1 = arith.constant 0 : i32
    return %c0_i32, %c0_i32_0 : i32, i32
  }
  func.func @transform_3(%arg0: i32) -> (i32, i32) {
    %c0_i32 = arith.constant 0 : i32
    %c0_i32_0 = arith.constant 0 : i32
    %c0_i32_1 = arith.constant 0 : i32
    return %c0_i32, %c0_i32_0 : i32, i32
  }
  func.func @transform_4(%arg0: i32) -> (i32, i32, i32) {
    %c0_i32 = arith.constant 0 : i32
    %c0_i32_0 = arith.constant 0 : i32
    %c0_i32_1 = arith.constant 0 : i32
    return %arg0, %c0_i32, %c0_i32_0 : i32, i32, i32
  }
  func.func @transform_5(%arg0: i32) -> (i32, i32, i32) {
    %c0_i32 = arith.constant 0 : i32
    %c0_i32_0 = arith.constant 0 : i32
    %c0_i32_1 = arith.constant 0 : i32
    return %arg0, %c0_i32, %c0_i32_0 : i32, i32, i32
  }
}

</mosaic_0001>

<llo_original>
// kernel: tpu_custom_call.1
$region0: #{tpu_custom_call.1}
  #allocation0 [shape = 'u32[]', space=smem, size = 0x4, offset = 0x4, fixed_abs, tag = 'smem constant byte address 0x4 - core index']
  #allocation1 [shape = 'u32[72,128]{1,0:T(1,128)}', space=vmem, size = 0x9000, scoped, tag = 'internal scratch']
  %s0 = inlined_call_operand.hbm [shape: f32[16,16], index: 0, kind: input, shape index: {}]
  %s1 = inlined_call_operand.hbm [shape: f32[16,16], index: 1, kind: input, shape index: {}]
  %s2 = inlined_call_operand.hbm [shape: f32[16,16], index: 2, kind: input, shape index: {}]
  %s3 = inlined_call_operand.hbm [shape: f32[16,16], index: 3, kind: input, shape index: {}]
  %s4 = inlined_call_operand.hbm [shape: f32[6,16,16], index: 4, kind: input, shape index: {}]
  %s5 = inlined_call_operand.hbm [shape: f32[6,16,16], index: 5, kind: output, shape index: {}]
  %s6 = sld [smem:[#allocation0]]
  $region50: #{tpu_custom_call.1} parent=0
    _
  %s8 = ssub.s32 1, %s6
  %s9 = scalar_select 0, %s8, %s6
  $region1: #{tpu_custom_call.1} parent=0
    #allocation2 [shape = 'u8[8192]{0}', space=vmem, size = 0x2000, scoped, tag = 'input window, operand 0, single buffered']
    #allocation3 [shape = 's32[1]{0}', space=sflag, size = 0x4, scoped, tag = 'scoped memory for tpu_custom_call.1']
    #allocation4 [shape = 's32[1]{0}', space=sflag, size = 0x4, scoped, tag = 'scoped memory for tpu_custom_call.1']
    #allocation5 [shape = 'u8[8192]{0}', space=vmem, size = 0x2000, scoped, tag = 'input window, operand 1, single buffered']
    #allocation6 [shape = 's32[1]{0}', space=sflag, size = 0x4, scoped, tag = 'scoped memory for tpu_custom_call.1']
    #allocation7 [shape = 'u8[8192]{0}', space=vmem, size = 0x2000, scoped, tag = 'input window, operand 2, single buffered']
    #allocation8 [shape = 'u8[8192]{0}', space=vmem, size = 0x2000, scoped, tag = 'input window, operand 3, single buffered']
    #allocation9 [shape = 's32[1]{0}', space=sflag, size = 0x4, scoped, tag = 'scoped memory for tpu_custom_call.1']
    #allocation10 [shape = 'u8[49152]{0}', space=vmem, size = 0xc000, scoped, tag = 'input window, operand 4, single buffered']
    #allocation11 [shape = 'u8[49152]{0}', space=vmem, size = 0xc000, scoped, tag = 'output window, operand 0, single buffered']
    %10 = vsyncpa [#allocation3], 0
    %11 = vsyncpa [#allocation6], 0
    %12 = vsyncpa [#allocation9], 0
    %13 = vsyncpa [#allocation4], 0
    // Predicated region
    $region2: #{tpu_custom_call.1} parent=1 // pred_check
      _
    $region3: #{tpu_custom_call.1} parent=1 // pred_check_branch
      %15 = sbr.rel (0) target = $region5
    $region4: #{tpu_custom_call.1} parent=1 // pred_region
      %17 = vsyncadd [#allocation3], 0
      %s18 = sshll.u32 %s0, 4
      %s19 = int_to_ptr.hbm [resolvable:$true] %s18
      %s20 = sshll.u32 [#allocation2], 4
      %s21 = int_to_ptr.vmem [resolvable:$true] %s20
      %26 = dma.hbm_to_vmem [thread:$0]  %s19, 256, %s21, [#allocation3], 128, 128, 8
    $region5: #{tpu_custom_call.1} parent=1 // pred_fallthru
      _
    // Predicated region
    $region6: #{tpu_custom_call.1} parent=1 // pred_check
      _
    $region7: #{tpu_custom_call.1} parent=1 // pred_check_branch
      %28 = sbr.rel (0) target = $region9
    $region8: #{tpu_custom_call.1} parent=1 // pred_region
      %30 = vsyncadd [#allocation6], 0
      %s31 = sshll.u32 %s1, 4
      %s32 = int_to_ptr.hbm [resolvable:$true] %s31
      %s33 = sshll.u32 [#allocation5], 4
      %s34 = int_to_ptr.vmem [resolvable:$true] %s33
      %39 = dma.hbm_to_vmem [thread:$0]  %s32, 256, %s34, [#allocation6], 128, 128, 8
    $region9: #{tpu_custom_call.1} parent=1 // pred_fallthru
      _
    // Predicated region
    $region10: #{tpu_custom_call.1} parent=1 // pred_check
      _
    $region11: #{tpu_custom_call.1} parent=1 // pred_check_branch
      %41 = sbr.rel (0) target = $region13
    $region12: #{tpu_custom_call.1} parent=1 // pred_region
      %43 = vsyncadd [#allocation6], 0
      %s44 = sshll.u32 %s2, 4
      %s45 = int_to_ptr.hbm [resolvable:$true] %s44
      %s46 = sshll.u32 [#allocation7], 4
      %s47 = int_to_ptr.vmem [resolvable:$true] %s46
      %52 = dma.hbm_to_vmem [thread:$0]  %s45, 256, %s47, [#allocation6], 128, 128, 8
    $region13: #{tpu_custom_call.1} parent=1 // pred_fallthru
      _
    // Predicated region
    $region14: #{tpu_custom_call.1} parent=1 // pred_check
      _
    $region15: #{tpu_custom_call.1} parent=1 // pred_check_branch
      %54 = sbr.rel (0) target = $region17
    $region16: #{tpu_custom_call.1} parent=1 // pred_region
      %56 = vsyncadd [#allocation9], 0
      %s57 = sshll.u32 %s3, 4
      %s58 = int_to_ptr.hbm [resolvable:$true] %s57
      %s59 = sshll.u32 [#allocation8], 4
      %s60 = int_to_ptr.vmem [resolvable:$true] %s59
      %65 = dma.hbm_to_vmem [thread:$0]  %s58, 256, %s60, [#allocation9], 128, 128, 8
    $region17: #{tpu_custom_call.1} parent=1 // pred_fallthru
      _
    // Predicated region
    $region18: #{tpu_custom_call.1} parent=1 // pred_check
      _
    $region19: #{tpu_custom_call.1} parent=1 // pred_check_branch
      %67 = sbr.rel (0) target = $region21
    $region20: #{tpu_custom_call.1} parent=1 // pred_region
      %69 = vsyncadd [#allocation9], 0
      %s70 = sshll.u32 %s4, 4
      %s71 = int_to_ptr.hbm [resolvable:$true] %s70
      %s72 = sshll.u32 [#allocation10], 4
      %s73 = int_to_ptr.vmem [resolvable:$true] %s72
      %78 = dma.hbm_to_vmem [thread:$0]  %s71, 1536, %s73, [#allocation9], 128, 128, 8
    $region21: #{tpu_custom_call.1} parent=1 // pred_fallthru
      _
    // Predicated region
    $region22: #{tpu_custom_call.1} parent=1 // pred_check
      _
    $region23: #{tpu_custom_call.1} parent=1 // pred_check_branch
      %80 = sbr.rel (0) target = $region25
    $region24: #{tpu_custom_call.1} parent=1 // pred_region
      %82 = dma.done [#allocation3], 256
    $region25: #{tpu_custom_call.1} parent=1 // pred_fallthru
      _
    // Predicated region
    $region26: #{tpu_custom_call.1} parent=1 // pred_check
      _
    $region27: #{tpu_custom_call.1} parent=1 // pred_check_branch
      %84 = sbr.rel (0) target = $region29
    $region28: #{tpu_custom_call.1} parent=1 // pred_region
      %86 = dma.done [#allocation6], 256
    $region29: #{tpu_custom_call.1} parent=1 // pred_fallthru
      _
    // Predicated region
    $region30: #{tpu_custom_call.1} parent=1 // pred_check
      _
    $region31: #{tpu_custom_call.1} parent=1 // pred_check_branch
      %88 = sbr.rel (0) target = $region33
    $region32: #{tpu_custom_call.1} parent=1 // pred_region
      %90 = dma.done [#allocation6], 256
    $region33: #{tpu_custom_call.1} parent=1 // pred_fallthru
      _
    // Predicated region
    $region34: #{tpu_custom_call.1} parent=1 // pred_check
      _
    $region35: #{tpu_custom_call.1} parent=1 // pred_check_branch
      %92 = sbr.rel (0) target = $region37
    $region36: #{tpu_custom_call.1} parent=1 // pred_region
      %94 = dma.done [#allocation9], 256
    $region37: #{tpu_custom_call.1} parent=1 // pred_fallthru
      _
    // Predicated region
    $region38: #{tpu_custom_call.1} parent=1 // pred_check
      _
    $region39: #{tpu_custom_call.1} parent=1 // pred_check_branch
      %96 = sbr.rel (0) target = $region41
    $region40: #{tpu_custom_call.1} parent=1 // pred_region
      %98 = dma.done [#allocation9], 1536
    $region41: #{tpu_custom_call.1} parent=1 // pred_fallthru
      _
    %v99 = vld [vmem:[#allocation10] sm:$0xff]
    %v100 = vld [vmem:[#allocation10 + $0x8] sm:$0xff]
    %v101 = vld [vmem:[#allocation10 + $0x10] sm:$0xff]
    %v102 = vld [vmem:[#allocation10 + $0x18] sm:$0xff]
    %v103 = vld [vmem:[#allocation10 + $0x20] sm:$0xff]
    %v104 = vld [vmem:[#allocation10 + $0x28] sm:$0xff]
    %v105 = vld [vmem:[#allocation10 + $0x30] sm:$0xff]
    %v106 = vld [vmem:[#allocation10 + $0x38] sm:$0xff]
    %v107 = vld [vmem:[#allocation10 + $0x40] sm:$0xff]
    %v108 = vld [vmem:[#allocation10 + $0x48] sm:$0xff]
    %v109 = vld [vmem:[#allocation10 + $0x50] sm:$0xff]
    %v110 = vld [vmem:[#allocation10 + $0x58] sm:$0xff]
    %v111 = vld [vmem:[#allocation2] sm:$0xff]
    %v112 = vld [vmem:[#allocation2 + $0x8] sm:$0xff]
    %v113 = vld [vmem:[#allocation5] sm:$0xff]
    %v114 = vld [vmem:[#allocation5 + $0x8] sm:$0xff]
    %v115 = vld [vmem:[#allocation7] sm:$0xff]
    %v116 = vld [vmem:[#allocation7 + $0x8] sm:$0xff]
    %v117 = vld [vmem:[#allocation8] sm:$0xff]
    %v118 = vld [vmem:[#allocation8 + $0x8] sm:$0xff]
    %vm119 = vcmask 130048
    %v121 = vsel %vm119, %v111, 0
    %v124 = vsel %vm119, %v112, 0
    %126 = vmatpush.msra.mxu0 0.0
    %127 = vmatpush.msra.mxu0 0.0
    %128 = vmatpush.msra.mxu0 0.0
    %129 = vmatpush.msra.mxu0 0.0
    %130 = vmatpush.msra.mxu0 0.0
    %131 = vmatpush.msra.mxu0 0.0
    %132 = vmatpush.msra.mxu0 0.0
    %133 = vmatpush.msra.mxu0 0.0
    %134 = vmatpush.msra.mxu0 0.0
    %135 = vmatpush.msra.mxu0 0.0
    %136 = vmatpush.msra.mxu0 0.0
    %137 = vmatpush.msra.mxu0 0.0
    %138 = vmatpush.msra.mxu0 0.0
    %139 = vmatpush.msra.mxu0 0.0
    %140 = vmatpush.msra.mxu0 %v100
    %141 = vmatpush.msra.mxu0 %v99
    %142 = vmatmul.f32.gmra.mxu0 %v121
    %v143 = vpop.f32.mrf.mxu0
    %v144 = vadd.f32 0.0, %v143
    %145 = vmatmul.f32.gmra.mxu0 %v124
    %v146 = vpop.f32.mrf.mxu0
    %v147 = vadd.f32 0.0, %v146
    %148 = vdwg.mxu0
    %v150 = vsel %vm119, %v144, 0
    %v153 = vsel %vm119, %v147, 0
    %155 = vmatpush.msra.mxu0 0.0
    %156 = vmatpush.msra.mxu0 0.0
    %157 = vmatpush.msra.mxu0 0.0
    %158 = vmatpush.msra.mxu0 0.0
    %159 = vmatpush.msra.mxu0 0.0
    %160 = vmatpush.msra.mxu0 0.0
    %161 = vmatpush.msra.mxu0 0.0
    %162 = vmatpush.msra.mxu0 0.0
    %163 = vmatpush.msra.mxu0 0.0
    %164 = vmatpush.msra.mxu0 0.0
    %165 = vmatpush.msra.mxu0 0.0
    %166 = vmatpush.msra.mxu0 0.0
    %167 = vmatpush.msra.mxu0 0.0
    %168 = vmatpush.msra.mxu0 0.0
    %169 = vmatpush.msra.mxu0 %v116
    %170 = vmatpush.msra.mxu0 %v115
    %171 = vmatmul.f32.gmra.mxu0 %v150
    %v172 = vpop.f32.mrf.mxu0
    %v173 = vadd.f32 0.0, %v172
    %174 = vmatmul.f32.gmra.mxu0 %v153
    %v175 = vpop.f32.mrf.mxu0
    %v176 = vadd.f32 0.0, %v175
    %177 = vdwg.mxu0
    %v179 = vsel %vm119, %v113, 0
    %v182 = vsel %vm119, %v114, 0
    %184 = vmatpush.msra.mxu0 0.0
    %185 = vmatpush.msra.mxu0 0.0
    %186 = vmatpush.msra.mxu0 0.0
    %187 = vmatpush.msra.mxu0 0.0
    %188 = vmatpush.msra.mxu0 0.0
    %189 = vmatpush.msra.mxu0 0.0
    %190 = vmatpush.msra.mxu0 0.0
    %191 = vmatpush.msra.mxu0 0.0
    %192 = vmatpush.msra.mxu0 0.0
    %193 = vmatpush.msra.mxu0 0.0
    %194 = vmatpush.msra.mxu0 0.0
    %195 = vmatpush.msra.mxu0 0.0
    %196 = vmatpush.msra.mxu0 0.0
    %197 = vmatpush.msra.mxu0 0.0
    %198 = vmatpush.msra.mxu0 %v100
    %199 = vmatpush.msra.mxu0 %v99
    %200 = vmatmul.f32.gmra.mxu0 %v179
    %v201 = vpop.f32.mrf.mxu0
    %v202 = vadd.f32 0.0, %v201
    %203 = vmatmul.f32.gmra.mxu0 %v182
    %v204 = vpop.f32.mrf.mxu0
    %v205 = vadd.f32 0.0, %v204
    %206 = vdwg.mxu0
    %v208 = vsel %vm119, %v202, 0
    %v211 = vsel %vm119, %v205, 0
    %213 = vmatpush.msra.mxu0 0.0
    %214 = vmatpush.msra.mxu0 0.0
    %215 = vmatpush.msra.mxu0 0.0
    %216 = vmatpush.msra.mxu0 0.0
    %217 = vmatpush.msra.mxu0 0.0
    %218 = vmatpush.msra.mxu0 0.0
    %219 = vmatpush.msra.mxu0 0.0
    %220 = vmatpush.msra.mxu0 0.0
    %221 = vmatpush.msra.mxu0 0.0
    %222 = vmatpush.msra.mxu0 0.0
    %223 = vmatpush.msra.mxu0 0.0
    %224 = vmatpush.msra.mxu0 0.0
    %225 = vmatpush.msra.mxu0 0.0
    %226 = vmatpush.msra.mxu0 0.0
    %227 = vmatpush.msra.mxu0 %v118
    %228 = vmatpush.msra.mxu0 %v117
    %229 = vmatmul.f32.gmra.mxu0 %v208
    %v230 = vpop.f32.mrf.mxu0
    %v231 = vadd.f32 0.0, %v230
    %232 = vmatmul.f32.gmra.mxu0 %v211
    %v233 = vpop.f32.mrf.mxu0
    %v234 = vadd.f32 0.0, %v233
    %235 = vdwg.mxu0
    %v236 = vmul.f32 %v173, %v173
    %v237 = vmul.f32 %v176, %v176
    %v238 = vmul.f32 %v231, %v231
    %v239 = vmul.f32 %v234, %v234
    %v240 = vadd.f32 %v236, %v238
    %v241 = vadd.f32 %v237, %v239
    %v242 = vrsqrt.pop %v240
    %v243 = vmul.f32 %v242, %v240
    %v244 = vmul.f32 %v243, %v242
    %v245 = vmul.f32 0.5, %v244
    %v246 = vsub.f32 1.5, %v245
    %v247 = vmul.f32 %v242, %v246
    %v248 = vmul.f32 %v240, %v247
    %vm249 = vcmp.eq.f32.partialorder %v240, inf
    %v250 = vsel %vm249, %v240, %v248
    %vm251 = vcmp.eq.f32.partialorder %v240, 0.0
    %v252 = vand.u32 %v240, 2147483648
    %v253 = vsel %vm251, %v252, %v250
    %v254 = vrsqrt.pop %v241
    %v255 = vmul.f32 %v254, %v241
    %v256 = vmul.f32 %v255, %v254
    %v257 = vmul.f32 0.5, %v256
    %v258 = vsub.f32 1.5, %v257
    %v259 = vmul.f32 %v254, %v258
    %v260 = vmul.f32 %v241, %v259
    %vm261 = vcmp.eq.f32.partialorder %v241, inf
    %v262 = vsel %vm261, %v241, %v260
    %vm263 = vcmp.eq.f32.partialorder %v241, 0.0
    %v264 = vand.u32 %v241, 2147483648
    %v265 = vsel %vm263, %v264, %v262
    %vm266 = vcmp.lt.f32.partialorder %v253, 0.25
    %vm267 = vcmp.lt.f32.partialorder %v265, 0.25
    %v268 = vsel %vm266, 0.0, %v253
    %v269 = vsel %vm267, 0.0, %v265
    %270 = vmatpush.msra.mxu0 0.0
    %271 = vmatpush.msra.mxu0 0.0
    %272 = vmatpush.msra.mxu0 0.0
    %273 = vmatpush.msra.mxu0 0.0
    %274 = vmatpush.msra.mxu0 0.0
    %275 = vmatpush.msra.mxu0 0.0
    %276 = vmatpush.msra.mxu0 0.0
    %277 = vmatpush.msra.mxu0 0.0
    %278 = vmatpush.msra.mxu0 0.0
    %279 = vmatpush.msra.mxu0 0.0
    %280 = vmatpush.msra.mxu0 0.0
    %281 = vmatpush.msra.mxu0 0.0
    %282 = vmatpush.msra.mxu0 0.0
    %283 = vmatpush.msra.mxu0 0.0
    %284 = vmatpush.msra.mxu0 %v102
    %285 = vmatpush.msra.mxu0 %v101
    %286 = vmatmul.f32.gmra.mxu0 %v121
    %v287 = vpop.f32.mrf.mxu0
    %v288 = vadd.f32 0.0, %v287
    %289 = vmatmul.f32.gmra.mxu0 %v124
    %v290 = vpop.f32.mrf.mxu0
    %v291 = vadd.f32 0.0, %v290
    %292 = vdwg.mxu0
    %v294 = vsel %vm119, %v288, 0
    %v297 = vsel %vm119, %v291, 0
    %299 = vmatpush.msra.mxu0 0.0
    %300 = vmatpush.msra.mxu0 0.0
    %301 = vmatpush.msra.mxu0 0.0
    %302 = vmatpush.msra.mxu0 0.0
    %303 = vmatpush.msra.mxu0 0.0
    %304 = vmatpush.msra.mxu0 0.0
    %305 = vmatpush.msra.mxu0 0.0
    %306 = vmatpush.msra.mxu0 0.0
    %307 = vmatpush.msra.mxu0 0.0
    %308 = vmatpush.msra.mxu0 0.0
    %309 = vmatpush.msra.mxu0 0.0
    %310 = vmatpush.msra.mxu0 0.0
    %311 = vmatpush.msra.mxu0 0.0
    %312 = vmatpush.msra.mxu0 0.0
    %313 = vmatpush.msra.mxu0 %v116
    %314 = vmatpush.msra.mxu0 %v115
    %315 = vmatmul.f32.gmra.mxu0 %v294
    %v316 = vpop.f32.mrf.mxu0
    %v317 = vadd.f32 0.0, %v316
    %318 = vmatmul.f32.gmra.mxu0 %v297
    %v319 = vpop.f32.mrf.mxu0
    %v320 = vadd.f32 0.0, %v319
    %321 = vdwg.mxu0
    %322 = vmatpush.msra.mxu0 0.0
    %323 = vmatpush.msra.mxu0 0.0
    %324 = vmatpush.msra.mxu0 0.0
    %325 = vmatpush.msra.mxu0 0.0
    %326 = vmatpush.msra.mxu0 0.0
    %327 = vmatpush.msra.mxu0 0.0
    %328 = vmatpush.msra.mxu0 0.0
    %329 = vmatpush.msra.mxu0 0.0
    %330 = vmatpush.msra.mxu0 0.0
    %331 = vmatpush.msra.mxu0 0.0
    %332 = vmatpush.msra.mxu0 0.0
    %333 = vmatpush.msra.mxu0 0.0
    %334 = vmatpush.msra.mxu0 0.0
    %335 = vmatpush.msra.mxu0 0.0
    %336 = vmatpush.msra.mxu0 %v102
    %337 = vmatpush.msra.mxu0 %v101
    %338 = vmatmul.f32.gmra.mxu0 %v179
    %v339 = vpop.f32.mrf.mxu0
    %v340 = vadd.f32 0.0, %v339
    %341 = vmatmul.f32.gmra.mxu0 %v182
    %v342 = vpop.f32.mrf.mxu0
    %v343 = vadd.f32 0.0, %v342
    %344 = vdwg.mxu0
    %v346 = vsel %vm119, %v340, 0
    %v349 = vsel %vm119, %v343, 0
    %351 = vmatpush.msra.mxu0 0.0
    %352 = vmatpush.msra.mxu0 0.0
    %353 = vmatpush.msra.mxu0 0.0
    %354 = vmatpush.msra.mxu0 0.0
    %355 = vmatpush.msra.mxu0 0.0
    %356 = vmatpush.msra.mxu0 0.0
    %357 = vmatpush.msra.mxu0 0.0
    %358 = vmatpush.msra.mxu0 0.0
    %359 = vmatpush.msra.mxu0 0.0
    %360 = vmatpush.msra.mxu0 0.0
    %361 = vmatpush.msra.mxu0 0.0
    %362 = vmatpush.msra.mxu0 0.0
    %363 = vmatpush.msra.mxu0 0.0
    %364 = vmatpush.msra.mxu0 0.0
    %365 = vmatpush.msra.mxu0 %v118
    %366 = vmatpush.msra.mxu0 %v117
    %367 = vmatmul.f32.gmra.mxu0 %v346
    %v368 = vpop.f32.mrf.mxu0
    %v369 = vadd.f32 0.0, %v368
    %370 = vmatmul.f32.gmra.mxu0 %v349
    %v371 = vpop.f32.mrf.mxu0
    %v372 = vadd.f32 0.0, %v371
    %373 = vdwg.mxu0
    %v374 = vmul.f32 %v317, %v317
    %v375 = vmul.f32 %v320, %v320
    %v376 = vmul.f32 %v369, %v369
    %v377 = vmul.f32 %v372, %v372
    %v378 = vadd.f32 %v374, %v376
    %v379 = vadd.f32 %v375, %v377
    %v380 = vrsqrt.pop %v378
    %v381 = vmul.f32 %v380, %v378
    %v382 = vmul.f32 %v381, %v380
    %v383 = vmul.f32 0.5, %v382
    %v384 = vsub.f32 1.5, %v383
    %v385 = vmul.f32 %v380, %v384
    %v386 = vmul.f32 %v378, %v385
    %vm387 = vcmp.eq.f32.partialorder %v378, inf
    %v388 = vsel %vm387, %v378, %v386
    %vm389 = vcmp.eq.f32.partialorder %v378, 0.0
    %v390 = vand.u32 %v378, 2147483648
    %v391 = vsel %vm389, %v390, %v388
    %v392 = vrsqrt.pop %v379
    %v393 = vmul.f32 %v392, %v379
    %v394 = vmul.f32 %v393, %v392
    %v395 = vmul.f32 0.5, %v394
    %v396 = vsub.f32 1.5, %v395
    %v397 = vmul.f32 %v392, %v396
    %v398 = vmul.f32 %v379, %v397
    %vm399 = vcmp.eq.f32.partialorder %v379, inf
    %v400 = vsel %vm399, %v379, %v398
    %vm401 = vcmp.eq.f32.partialorder %v379, 0.0
    %v402 = vand.u32 %v379, 2147483648
    %v403 = vsel %vm401, %v402, %v400
    %vm404 = vcmp.lt.f32.partialorder %v391, 0.25
    %vm405 = vcmp.lt.f32.partialorder %v403, 0.25
    %v406 = vsel %vm404, 0.0, %v391
    %v407 = vsel %vm405, 0.0, %v403
    %408 = vmatpush.msra.mxu0 0.0
    %409 = vmatpush.msra.mxu0 0.0
    %410 = vmatpush.msra.mxu0 0.0
    %411 = vmatpush.msra.mxu0 0.0
    %412 = vmatpush.msra.mxu0 0.0
    %413 = vmatpush.msra.mxu0 0.0
    %414 = vmatpush.msra.mxu0 0.0
    %415 = vmatpush.msra.mxu0 0.0
    %416 = vmatpush.msra.mxu0 0.0
    %417 = vmatpush.msra.mxu0 0.0
    %418 = vmatpush.msra.mxu0 0.0
    %419 = vmatpush.msra.mxu0 0.0
    %420 = vmatpush.msra.mxu0 0.0
    %421 = vmatpush.msra.mxu0 0.0
    %422 = vmatpush.msra.mxu0 %v104
    %423 = vmatpush.msra.mxu0 %v103
    %424 = vmatmul.f32.gmra.mxu0 %v121
    %v425 = vpop.f32.mrf.mxu0
    %v426 = vadd.f32 0.0, %v425
    %427 = vmatmul.f32.gmra.mxu0 %v124
    %v428 = vpop.f32.mrf.mxu0
    %v429 = vadd.f32 0.0, %v428
    %430 = vdwg.mxu0
    %v432 = vsel %vm119, %v426, 0
    %v435 = vsel %vm119, %v429, 0
    %437 = vmatpush.msra.mxu0 0.0
    %438 = vmatpush.msra.mxu0 0.0
    %439 = vmatpush.msra.mxu0 0.0
    %440 = vmatpush.msra.mxu0 0.0
    %441 = vmatpush.msra.mxu0 0.0
    %442 = vmatpush.msra.mxu0 0.0
    %443 = vmatpush.msra.mxu0 0.0
    %444 = vmatpush.msra.mxu0 0.0
    %445 = vmatpush.msra.mxu0 0.0
    %446 = vmatpush.msra.mxu0 0.0
    %447 = vmatpush.msra.mxu0 0.0
    %448 = vmatpush.msra.mxu0 0.0
    %449 = vmatpush.msra.mxu0 0.0
    %450 = vmatpush.msra.mxu0 0.0
    %451 = vmatpush.msra.mxu0 %v116
    %452 = vmatpush.msra.mxu0 %v115
    %453 = vmatmul.f32.gmra.mxu0 %v432
    %v454 = vpop.f32.mrf.mxu0
    %v455 = vadd.f32 0.0, %v454
    %456 = vmatmul.f32.gmra.mxu0 %v435
    %v457 = vpop.f32.mrf.mxu0
    %v458 = vadd.f32 0.0, %v457
    %459 = vdwg.mxu0
    %460 = vmatpush.msra.mxu0 0.0
    %461 = vmatpush.msra.mxu0 0.0
    %462 = vmatpush.msra.mxu0 0.0
    %463 = vmatpush.msra.mxu0 0.0
    %464 = vmatpush.msra.mxu0 0.0
    %465 = vmatpush.msra.mxu0 0.0
    %466 = vmatpush.msra.mxu0 0.0
    %467 = vmatpush.msra.mxu0 0.0
    %468 = vmatpush.msra.mxu0 0.0
    %469 = vmatpush.msra.mxu0 0.0
    %470 = vmatpush.msra.mxu0 0.0
    %471 = vmatpush.msra.mxu0 0.0
    %472 = vmatpush.msra.mxu0 0.0
    %473 = vmatpush.msra.mxu0 0.0
    %474 = vmatpush.msra.mxu0 %v104
    %475 = vmatpush.msra.mxu0 %v103
    %476 = vmatmul.f32.gmra.mxu0 %v179
    %v477 = vpop.f32.mrf.mxu0
    %v478 = vadd.f32 0.0, %v477
    %479 = vmatmul.f32.gmra.mxu0 %v182
    %v480 = vpop.f32.mrf.mxu0
    %v481 = vadd.f32 0.0, %v480
    %482 = vdwg.mxu0
    %v484 = vsel %vm119, %v478, 0
    %v487 = vsel %vm119, %v481, 0
    %489 = vmatpush.msra.mxu0 0.0
    %490 = vmatpush.msra.mxu0 0.0
    %491 = vmatpush.msra.mxu0 0.0
    %492 = vmatpush.msra.mxu0 0.0
    %493 = vmatpush.msra.mxu0 0.0
    %494 = vmatpush.msra.mxu0 0.0
    %495 = vmatpush.msra.mxu0 0.0
    %496 = vmatpush.msra.mxu0 0.0
    %497 = vmatpush.msra.mxu0 0.0
    %498 = vmatpush.msra.mxu0 0.0
    %499 = vmatpush.msra.mxu0 0.0
    %500 = vmatpush.msra.mxu0 0.0
    %501 = vmatpush.msra.mxu0 0.0
    %502 = vmatpush.msra.mxu0 0.0
    %503 = vmatpush.msra.mxu0 %v118
    %504 = vmatpush.msra.mxu0 %v117
    %505 = vmatmul.f32.gmra.mxu0 %v484
    %v506 = vpop.f32.mrf.mxu0
    %v507 = vadd.f32 0.0, %v506
    %508 = vmatmul.f32.gmra.mxu0 %v487
    %v509 = vpop.f32.mrf.mxu0
    %v510 = vadd.f32 0.0, %v509
    %511 = vdwg.mxu0
    %v512 = vmul.f32 %v455, %v455
    %v513 = vmul.f32 %v458, %v458
    %v514 = vmul.f32 %v507, %v507
    %v515 = vmul.f32 %v510, %v510
    %v516 = vadd.f32 %v512, %v514
    %v517 = vadd.f32 %v513, %v515
    %v518 = vrsqrt.pop %v516
    %v519 = vmul.f32 %v518, %v516
    %v520 = vmul.f32 %v519, %v518
    %v521 = vmul.f32 0.5, %v520
    %v522 = vsub.f32 1.5, %v521
    %v523 = vmul.f32 %v518, %v522
    %v524 = vmul.f32 %v516, %v523
    %vm525 = vcmp.eq.f32.partialorder %v516, inf
    %v526 = vsel %vm525, %v516, %v524
    %vm527 = vcmp.eq.f32.partialorder %v516, 0.0
    %v528 = vand.u32 %v516, 2147483648
    %v529 = vsel %vm527, %v528, %v526
    %v530 = vrsqrt.pop %v517
    %v531 = vmul.f32 %v530, %v517
    %v532 = vmul.f32 %v531, %v530
    %v533 = vmul.f32 0.5, %v532
    %v534 = vsub.f32 1.5, %v533
    %v535 = vmul.f32 %v530, %v534
    %v536 = vmul.f32 %v517, %v535
    %vm537 = vcmp.eq.f32.partialorder %v517, inf
    %v538 = vsel %vm537, %v517, %v536
    %vm539 = vcmp.eq.f32.partialorder %v517, 0.0
    %v540 = vand.u32 %v517, 2147483648
    %v541 = vsel %vm539, %v540, %v538
    %vm542 = vcmp.lt.f32.partialorder %v529, 0.25
    %vm543 = vcmp.lt.f32.partialorder %v541, 0.25
    %v544 = vsel %vm542, 0.0, %v529
    %v545 = vsel %vm543, 0.0, %v541
    %546 = vmatpush.msra.mxu0 0.0
    %547 = vmatpush.msra.mxu0 0.0
    %548 = vmatpush.msra.mxu0 0.0
    %549 = vmatpush.msra.mxu0 0.0
    %550 = vmatpush.msra.mxu0 0.0
    %551 = vmatpush.msra.mxu0 0.0
    %552 = vmatpush.msra.mxu0 0.0
    %553 = vmatpush.msra.mxu0 0.0
    %554 = vmatpush.msra.mxu0 0.0
    %555 = vmatpush.msra.mxu0 0.0
    %556 = vmatpush.msra.mxu0 0.0
    %557 = vmatpush.msra.mxu0 0.0
    %558 = vmatpush.msra.mxu0 0.0
    %559 = vmatpush.msra.mxu0 0.0
    %560 = vmatpush.msra.mxu0 %v106
    %561 = vmatpush.msra.mxu0 %v105
    %562 = vmatmul.f32.gmra.mxu0 %v121
    %v563 = vpop.f32.mrf.mxu0
    %v564 = vadd.f32 0.0, %v563
    %565 = vmatmul.f32.gmra.mxu0 %v124
    %v566 = vpop.f32.mrf.mxu0
    %v567 = vadd.f32 0.0, %v566
    %568 = vdwg.mxu0
    %v570 = vsel %vm119, %v564, 0
    %v573 = vsel %vm119, %v567, 0
    %575 = vmatpush.msra.mxu0 0.0
    %576 = vmatpush.msra.mxu0 0.0
    %577 = vmatpush.msra.mxu0 0.0
    %578 = vmatpush.msra.mxu0 0.0
    %579 = vmatpush.msra.mxu0 0.0
    %580 = vmatpush.msra.mxu0 0.0
    %581 = vmatpush.msra.mxu0 0.0
    %582 = vmatpush.msra.mxu0 0.0
    %583 = vmatpush.msra.mxu0 0.0
    %584 = vmatpush.msra.mxu0 0.0
    %585 = vmatpush.msra.mxu0 0.0
    %586 = vmatpush.msra.mxu0 0.0
    %587 = vmatpush.msra.mxu0 0.0
    %588 = vmatpush.msra.mxu0 0.0
    %589 = vmatpush.msra.mxu0 %v116
    %590 = vmatpush.msra.mxu0 %v115
    %591 = vmatmul.f32.gmra.mxu0 %v570
    %v592 = vpop.f32.mrf.mxu0
    %v593 = vadd.f32 0.0, %v592
    %594 = vmatmul.f32.gmra.mxu0 %v573
    %v595 = vpop.f32.mrf.mxu0
    %v596 = vadd.f32 0.0, %v595
    %597 = vdwg.mxu0
    %598 = vmatpush.msra.mxu0 0.0
    %599 = vmatpush.msra.mxu0 0.0
    %600 = vmatpush.msra.mxu0 0.0
    %601 = vmatpush.msra.mxu0 0.0
    %602 = vmatpush.msra.mxu0 0.0
    %603 = vmatpush.msra.mxu0 0.0
    %604 = vmatpush.msra.mxu0 0.0
    %605 = vmatpush.msra.mxu0 0.0
    %606 = vmatpush.msra.mxu0 0.0
    %607 = vmatpush.msra.mxu0 0.0
    %608 = vmatpush.msra.mxu0 0.0
    %609 = vmatpush.msra.mxu0 0.0
    %610 = vmatpush.msra.mxu0 0.0
    %611 = vmatpush.msra.mxu0 0.0
    %612 = vmatpush.msra.mxu0 %v106
    %613 = vmatpush.msra.mxu0 %v105
    %614 = vmatmul.f32.gmra.mxu0 %v179
    %v615 = vpop.f32.mrf.mxu0
    %v616 = vadd.f32 0.0, %v615
    %617 = vmatmul.f32.gmra.mxu0 %v182
    %v618 = vpop.f32.mrf.mxu0
    %v619 = vadd.f32 0.0, %v618
    %620 = vdwg.mxu0
    %v622 = vsel %vm119, %v616, 0
    %v625 = vsel %vm119, %v619, 0
    %627 = vmatpush.msra.mxu0 0.0
    %628 = vmatpush.msra.mxu0 0.0
    %629 = vmatpush.msra.mxu0 0.0
    %630 = vmatpush.msra.mxu0 0.0
    %631 = vmatpush.msra.mxu0 0.0
    %632 = vmatpush.msra.mxu0 0.0
    %633 = vmatpush.msra.mxu0 0.0
    %634 = vmatpush.msra.mxu0 0.0
    %635 = vmatpush.msra.mxu0 0.0
    %636 = vmatpush.msra.mxu0 0.0
    %637 = vmatpush.msra.mxu0 0.0
    %638 = vmatpush.msra.mxu0 0.0
    %639 = vmatpush.msra.mxu0 0.0
    %640 = vmatpush.msra.mxu0 0.0
    %641 = vmatpush.msra.mxu0 %v118
    %642 = vmatpush.msra.mxu0 %v117
    %643 = vmatmul.f32.gmra.mxu0 %v622
    %v644 = vpop.f32.mrf.mxu0
    %v645 = vadd.f32 0.0, %v644
    %646 = vmatmul.f32.gmra.mxu0 %v625
    %v647 = vpop.f32.mrf.mxu0
    %v648 = vadd.f32 0.0, %v647
    %649 = vdwg.mxu0
    %v650 = vmul.f32 %v593, %v593
    %v651 = vmul.f32 %v596, %v596
    %v652 = vmul.f32 %v645, %v645
    %v653 = vmul.f32 %v648, %v648
    %v654 = vadd.f32 %v650, %v652
    %v655 = vadd.f32 %v651, %v653
    %v656 = vrsqrt.pop %v654
    %v657 = vmul.f32 %v656, %v654
    %v658 = vmul.f32 %v657, %v656
    %v659 = vmul.f32 0.5, %v658
    %v660 = vsub.f32 1.5, %v659
    %v661 = vmul.f32 %v656, %v660
    %v662 = vmul.f32 %v654, %v661
    %vm663 = vcmp.eq.f32.partialorder %v654, inf
    %v664 = vsel %vm663, %v654, %v662
    %vm665 = vcmp.eq.f32.partialorder %v654, 0.0
    %v666 = vand.u32 %v654, 2147483648
    %v667 = vsel %vm665, %v666, %v664
    %v668 = vrsqrt.pop %v655
    %v669 = vmul.f32 %v668, %v655
    %v670 = vmul.f32 %v669, %v668
    %v671 = vmul.f32 0.5, %v670
    %v672 = vsub.f32 1.5, %v671
    %v673 = vmul.f32 %v668, %v672
    %v674 = vmul.f32 %v655, %v673
    %vm675 = vcmp.eq.f32.partialorder %v655, inf
    %v676 = vsel %vm675, %v655, %v674
    %vm677 = vcmp.eq.f32.partialorder %v655, 0.0
    %v678 = vand.u32 %v655, 2147483648
    %v679 = vsel %vm677, %v678, %v676
    %vm680 = vcmp.lt.f32.partialorder %v667, 0.25
    %vm681 = vcmp.lt.f32.partialorder %v679, 0.25
    %v682 = vsel %vm680, 0.0, %v667
    %v683 = vsel %vm681, 0.0, %v679
    %684 = vmatpush.msra.mxu0 0.0
    %685 = vmatpush.msra.mxu0 0.0
    %686 = vmatpush.msra.mxu0 0.0
    %687 = vmatpush.msra.mxu0 0.0
    %688 = vmatpush.msra.mxu0 0.0
    %689 = vmatpush.msra.mxu0 0.0
    %690 = vmatpush.msra.mxu0 0.0
    %691 = vmatpush.msra.mxu0 0.0
    %692 = vmatpush.msra.mxu0 0.0
    %693 = vmatpush.msra.mxu0 0.0
    %694 = vmatpush.msra.mxu0 0.0
    %695 = vmatpush.msra.mxu0 0.0
    %696 = vmatpush.msra.mxu0 0.0
    %697 = vmatpush.msra.mxu0 0.0
    %698 = vmatpush.msra.mxu0 %v108
    %699 = vmatpush.msra.mxu0 %v107
    %700 = vmatmul.f32.gmra.mxu0 %v121
    %v701 = vpop.f32.mrf.mxu0
    %v702 = vadd.f32 0.0, %v701
    %703 = vmatmul.f32.gmra.mxu0 %v124
    %v704 = vpop.f32.mrf.mxu0
    %v705 = vadd.f32 0.0, %v704
    %706 = vdwg.mxu0
    %v708 = vsel %vm119, %v702, 0
    %v711 = vsel %vm119, %v705, 0
    %713 = vmatpush.msra.mxu0 0.0
    %714 = vmatpush.msra.mxu0 0.0
    %715 = vmatpush.msra.mxu0 0.0
    %716 = vmatpush.msra.mxu0 0.0
    %717 = vmatpush.msra.mxu0 0.0
    %718 = vmatpush.msra.mxu0 0.0
    %719 = vmatpush.msra.mxu0 0.0
    %720 = vmatpush.msra.mxu0 0.0
    %721 = vmatpush.msra.mxu0 0.0
    %722 = vmatpush.msra.mxu0 0.0
    %723 = vmatpush.msra.mxu0 0.0
    %724 = vmatpush.msra.mxu0 0.0
    %725 = vmatpush.msra.mxu0 0.0
    %726 = vmatpush.msra.mxu0 0.0
    %727 = vmatpush.msra.mxu0 %v116
    %728 = vmatpush.msra.mxu0 %v115
    %729 = vmatmul.f32.gmra.mxu0 %v708
    %v730 = vpop.f32.mrf.mxu0
    %v731 = vadd.f32 0.0, %v730
    %732 = vmatmul.f32.gmra.mxu0 %v711
    %v733 = vpop.f32.mrf.mxu0
    %v734 = vadd.f32 0.0, %v733
    %735 = vdwg.mxu0
    %736 = vmatpush.msra.mxu0 0.0
    %737 = vmatpush.msra.mxu0 0.0
    %738 = vmatpush.msra.mxu0 0.0
    %739 = vmatpush.msra.mxu0 0.0
    %740 = vmatpush.msra.mxu0 0.0
    %741 = vmatpush.msra.mxu0 0.0
    %742 = vmatpush.msra.mxu0 0.0
    %743 = vmatpush.msra.mxu0 0.0
    %744 = vmatpush.msra.mxu0 0.0
    %745 = vmatpush.msra.mxu0 0.0
    %746 = vmatpush.msra.mxu0 0.0
    %747 = vmatpush.msra.mxu0 0.0
    %748 = vmatpush.msra.mxu0 0.0
    %749 = vmatpush.msra.mxu0 0.0
    %750 = vmatpush.msra.mxu0 %v108
    %751 = vmatpush.msra.mxu0 %v107
    %752 = vmatmul.f32.gmra.mxu0 %v179
    %v753 = vpop.f32.mrf.mxu0
    %v754 = vadd.f32 0.0, %v753
    %755 = vmatmul.f32.gmra.mxu0 %v182
    %v756 = vpop.f32.mrf.mxu0
    %v757 = vadd.f32 0.0, %v756
    %758 = vdwg.mxu0
    %v760 = vsel %vm119, %v754, 0
    %v763 = vsel %vm119, %v757, 0
    %765 = vmatpush.msra.mxu0 0.0
    %766 = vmatpush.msra.mxu0 0.0
    %767 = vmatpush.msra.mxu0 0.0
    %768 = vmatpush.msra.mxu0 0.0
    %769 = vmatpush.msra.mxu0 0.0
    %770 = vmatpush.msra.mxu0 0.0
    %771 = vmatpush.msra.mxu0 0.0
    %772 = vmatpush.msra.mxu0 0.0
    %773 = vmatpush.msra.mxu0 0.0
    %774 = vmatpush.msra.mxu0 0.0
    %775 = vmatpush.msra.mxu0 0.0
    %776 = vmatpush.msra.mxu0 0.0
    %777 = vmatpush.msra.mxu0 0.0
    %778 = vmatpush.msra.mxu0 0.0
    %779 = vmatpush.msra.mxu0 %v118
    %780 = vmatpush.msra.mxu0 %v117
    %781 = vmatmul.f32.gmra.mxu0 %v760
    %v782 = vpop.f32.mrf.mxu0
    %v783 = vadd.f32 0.0, %v782
    %784 = vmatmul.f32.gmra.mxu0 %v763
    %v785 = vpop.f32.mrf.mxu0
    %v786 = vadd.f32 0.0, %v785
    %787 = vdwg.mxu0
    %v788 = vmul.f32 %v731, %v731
    %v789 = vmul.f32 %v734, %v734
    %v790 = vmul.f32 %v783, %v783
    %v791 = vmul.f32 %v786, %v786
    %v792 = vadd.f32 %v788, %v790
    %v793 = vadd.f32 %v789, %v791
    %v794 = vrsqrt.pop %v792
    %v795 = vmul.f32 %v794, %v792
    %v796 = vmul.f32 %v795, %v794
    %v797 = vmul.f32 0.5, %v796
    %v798 = vsub.f32 1.5, %v797
    %v799 = vmul.f32 %v794, %v798
    %v800 = vmul.f32 %v792, %v799
    %vm801 = vcmp.eq.f32.partialorder %v792, inf
    %v802 = vsel %vm801, %v792, %v800
    %vm803 = vcmp.eq.f32.partialorder %v792, 0.0
    %v804 = vand.u32 %v792, 2147483648
    %v805 = vsel %vm803, %v804, %v802
    %v806 = vrsqrt.pop %v793
    %v807 = vmul.f32 %v806, %v793
    %v808 = vmul.f32 %v807, %v806
    %v809 = vmul.f32 0.5, %v808
    %v810 = vsub.f32 1.5, %v809
    %v811 = vmul.f32 %v806, %v810
    %v812 = vmul.f32 %v793, %v811
    %vm813 = vcmp.eq.f32.partialorder %v793, inf
    %v814 = vsel %vm813, %v793, %v812
    %vm815 = vcmp.eq.f32.partialorder %v793, 0.0
    %v816 = vand.u32 %v793, 2147483648
    %v817 = vsel %vm815, %v816, %v814
    %vm818 = vcmp.lt.f32.partialorder %v805, 0.25
    %vm819 = vcmp.lt.f32.partialorder %v817, 0.25
    %v820 = vsel %vm818, 0.0, %v805
    %v821 = vsel %vm819, 0.0, %v817
    %822 = vmatpush.msra.mxu0 0.0
    %823 = vmatpush.msra.mxu0 0.0
    %824 = vmatpush.msra.mxu0 0.0
    %825 = vmatpush.msra.mxu0 0.0
    %826 = vmatpush.msra.mxu0 0.0
    %827 = vmatpush.msra.mxu0 0.0
    %828 = vmatpush.msra.mxu0 0.0
    %829 = vmatpush.msra.mxu0 0.0
    %830 = vmatpush.msra.mxu0 0.0
    %831 = vmatpush.msra.mxu0 0.0
    %832 = vmatpush.msra.mxu0 0.0
    %833 = vmatpush.msra.mxu0 0.0
    %834 = vmatpush.msra.mxu0 0.0
    %835 = vmatpush.msra.mxu0 0.0
    %836 = vmatpush.msra.mxu0 %v110
    %837 = vmatpush.msra.mxu0 %v109
    %838 = vmatmul.f32.gmra.mxu0 %v121
    %v839 = vpop.f32.mrf.mxu0
    %v840 = vadd.f32 0.0, %v839
    %841 = vmatmul.f32.gmra.mxu0 %v124
    %v842 = vpop.f32.mrf.mxu0
    %v843 = vadd.f32 0.0, %v842
    %844 = vdwg.mxu0
    %v846 = vsel %vm119, %v840, 0
    %v849 = vsel %vm119, %v843, 0
    %851 = vmatpush.msra.mxu0 0.0
    %852 = vmatpush.msra.mxu0 0.0
    %853 = vmatpush.msra.mxu0 0.0
    %854 = vmatpush.msra.mxu0 0.0
    %855 = vmatpush.msra.mxu0 0.0
    %856 = vmatpush.msra.mxu0 0.0
    %857 = vmatpush.msra.mxu0 0.0
    %858 = vmatpush.msra.mxu0 0.0
    %859 = vmatpush.msra.mxu0 0.0
    %860 = vmatpush.msra.mxu0 0.0
    %861 = vmatpush.msra.mxu0 0.0
    %862 = vmatpush.msra.mxu0 0.0
    %863 = vmatpush.msra.mxu0 0.0
    %864 = vmatpush.msra.mxu0 0.0
    %865 = vmatpush.msra.mxu0 %v116
    %866 = vmatpush.msra.mxu0 %v115
    %867 = vmatmul.f32.gmra.mxu0 %v846
    %v868 = vpop.f32.mrf.mxu0
    %v869 = vadd.f32 0.0, %v868
    %870 = vmatmul.f32.gmra.mxu0 %v849
    %v871 = vpop.f32.mrf.mxu0
    %v872 = vadd.f32 0.0, %v871
    %873 = vdwg.mxu0
    %874 = vmatpush.msra.mxu0 0.0
    %875 = vmatpush.msra.mxu0 0.0
    %876 = vmatpush.msra.mxu0 0.0
    %877 = vmatpush.msra.mxu0 0.0
    %878 = vmatpush.msra.mxu0 0.0
    %879 = vmatpush.msra.mxu0 0.0
    %880 = vmatpush.msra.mxu0 0.0
    %881 = vmatpush.msra.mxu0 0.0
    %882 = vmatpush.msra.mxu0 0.0
    %883 = vmatpush.msra.mxu0 0.0
    %884 = vmatpush.msra.mxu0 0.0
    %885 = vmatpush.msra.mxu0 0.0
    %886 = vmatpush.msra.mxu0 0.0
    %887 = vmatpush.msra.mxu0 0.0
    %888 = vmatpush.msra.mxu0 %v110
    %889 = vmatpush.msra.mxu0 %v109
    %890 = vmatmul.f32.gmra.mxu0 %v179
    %v891 = vpop.f32.mrf.mxu0
    %v892 = vadd.f32 0.0, %v891
    %893 = vmatmul.f32.gmra.mxu0 %v182
    %v894 = vpop.f32.mrf.mxu0
    %v895 = vadd.f32 0.0, %v894
    %896 = vdwg.mxu0
    %v898 = vsel %vm119, %v892, 0
    %v901 = vsel %vm119, %v895, 0
    %903 = vmatpush.msra.mxu0 0.0
    %904 = vmatpush.msra.mxu0 0.0
    %905 = vmatpush.msra.mxu0 0.0
    %906 = vmatpush.msra.mxu0 0.0
    %907 = vmatpush.msra.mxu0 0.0
    %908 = vmatpush.msra.mxu0 0.0
    %909 = vmatpush.msra.mxu0 0.0
    %910 = vmatpush.msra.mxu0 0.0
    %911 = vmatpush.msra.mxu0 0.0
    %912 = vmatpush.msra.mxu0 0.0
    %913 = vmatpush.msra.mxu0 0.0
    %914 = vmatpush.msra.mxu0 0.0
    %915 = vmatpush.msra.mxu0 0.0
    %916 = vmatpush.msra.mxu0 0.0
    %917 = vmatpush.msra.mxu0 %v118
    %918 = vmatpush.msra.mxu0 %v117
    %919 = vmatmul.f32.gmra.mxu0 %v898
    %v920 = vpop.f32.mrf.mxu0
    %v921 = vadd.f32 0.0, %v920
    %922 = vmatmul.f32.gmra.mxu0 %v901
    %v923 = vpop.f32.mrf.mxu0
    %v924 = vadd.f32 0.0, %v923
    %925 = vdwg.mxu0
    %v926 = vmul.f32 %v869, %v869
    %v927 = vmul.f32 %v872, %v872
    %v928 = vmul.f32 %v921, %v921
    %v929 = vmul.f32 %v924, %v924
    %v930 = vadd.f32 %v926, %v928
    %v931 = vadd.f32 %v927, %v929
    %v932 = vrsqrt.pop %v930
    %v933 = vmul.f32 %v932, %v930
    %v934 = vmul.f32 %v933, %v932
    %v935 = vmul.f32 0.5, %v934
    %v936 = vsub.f32 1.5, %v935
    %v937 = vmul.f32 %v932, %v936
    %v938 = vmul.f32 %v930, %v937
    %vm939 = vcmp.eq.f32.partialorder %v930, inf
    %v940 = vsel %vm939, %v930, %v938
    %vm941 = vcmp.eq.f32.partialorder %v930, 0.0
    %v942 = vand.u32 %v930, 2147483648
    %v943 = vsel %vm941, %v942, %v940
    %v944 = vrsqrt.pop %v931
    %v945 = vmul.f32 %v944, %v931
    %v946 = vmul.f32 %v945, %v944
    %v947 = vmul.f32 0.5, %v946
    %v948 = vsub.f32 1.5, %v947
    %v949 = vmul.f32 %v944, %v948
    %v950 = vmul.f32 %v931, %v949
    %vm951 = vcmp.eq.f32.partialorder %v931, inf
    %v952 = vsel %vm951, %v931, %v950
    %vm953 = vcmp.eq.f32.partialorder %v931, 0.0
    %v954 = vand.u32 %v931, 2147483648
    %v955 = vsel %vm953, %v954, %v952
    %vm956 = vcmp.lt.f32.partialorder %v943, 0.25
    %vm957 = vcmp.lt.f32.partialorder %v955, 0.25
    %v958 = vsel %vm956, 0.0, %v943
    %v959 = vsel %vm957, 0.0, %v955
    %960 = vst.msk [vmem:[#allocation11] sm:$0xff] %vm119, %v268
    %961 = vst.msk [vmem:[#allocation11 + $0x8] sm:$0xff] %vm119, %v269
    %s962 = scalar_lea.vmem [#allocation11], 16
    %963 = vst.msk [vmem:[%s962] sm:$0xff] %vm119, %v406
    %964 = vst.msk [vmem:[%s962 + $0x8] sm:$0xff] %vm119, %v407
    %s965 = scalar_lea.vmem [#allocation11], 32
    %966 = vst.msk [vmem:[%s965] sm:$0xff] %vm119, %v544
    %967 = vst.msk [vmem:[%s965 + $0x8] sm:$0xff] %vm119, %v545
    %s968 = scalar_lea.vmem [#allocation11], 48
    %969 = vst.msk [vmem:[%s968] sm:$0xff] %vm119, %v682
    %970 = vst.msk [vmem:[%s968 + $0x8] sm:$0xff] %vm119, %v683
    %s971 = scalar_lea.vmem [#allocation11], 64
    %972 = vst.msk [vmem:[%s971] sm:$0xff] %vm119, %v820
    %973 = vst.msk [vmem:[%s971 + $0x8] sm:$0xff] %vm119, %v821
    %s974 = scalar_lea.vmem [#allocation11], 80
    %975 = vst.msk [vmem:[%s974] sm:$0xff] %vm119, %v958
    %976 = vst.msk [vmem:[%s974 + $0x8] sm:$0xff] %vm119, %v959
    // Predicated region
    $region42: #{tpu_custom_call.1} parent=1 // pred_check
      _
    $region43: #{tpu_custom_call.1} parent=1 // pred_check_branch
      %978 = sbr.rel (0) target = $region45
    $region44: #{tpu_custom_call.1} parent=1 // pred_region
      %980 = vsyncadd [#allocation4], 0
      %s981 = sshll.u32 [#allocation11], 4
      %s982 = int_to_ptr.vmem [resolvable:$true] %s981
      %s983 = sshll.u32 %s5, 4
      %s984 = int_to_ptr.hbm [resolvable:$true] %s983
      %989 = dma.vmem_to_hbm [thread:$0]  %s982, 1536, %s984, [#allocation4], 128, 128, 8
    $region45: #{tpu_custom_call.1} parent=1 // pred_fallthru
      _
    // Predicated region
    $region46: #{tpu_custom_call.1} parent=1 // pred_check
      _
    $region47: #{tpu_custom_call.1} parent=1 // pred_check_branch
      %991 = sbr.rel (0) target = $region49
    $region48: #{tpu_custom_call.1} parent=1 // pred_region
      %993 = dma.done [#allocation4], 1536
    $region49: #{tpu_custom_call.1} parent=1 // pred_fallthru
      _
    %994 = vsyncpa [#allocation3], 1
    %995 = vsyncpa [#allocation6], 1
    %996 = vsyncpa [#allocation9], 1
    %997 = vsyncpa [#allocation4], 1

</llo_original>
